<compile_context>
chip_gen: v6e
topology: v6e:2x2x1
jax: 0.10.0
libtpu: 0.0.40
codegen_flags: <defaults>
</compile_context>

<pallas_src>
import functools
import math

import numpy as np

import jax
import jax.numpy as jnp
from jax.experimental import pallas as pl
from jax.experimental.pallas import tpu as pltpu


def _round_up(a, b):
    return (a + b - 1) // b * b


def _compact_rel_pe_kernel(p_even_ref, p_odd_ref, o_ref, *, seq_len,
                           left_context_len, embed_dim, length_factor):
    """Fills one (row_tile, embed_dim) block of the compact relative PE table."""
    TL, E = o_ref.shape
    half = E // 2
    nbits = half.bit_length()

    # Global row index -> relative offset p (exact in int32, converted to f32 afterwards).
    row = jax.lax.broadcasted_iota(jnp.int32, (TL, 1), 0) + pl.program_id(0) * TL
    pos = (row - (seq_len + left_context_len - 1)).astype(jnp.float32)

    compression_length = float(embed_dim) ** 0.5
    length_scale = length_factor * embed_dim / (2.0 * math.pi)

    # sign() via selects (guaranteed-supported ops only); all of this is (TL, 1) work.
    sign = jnp.where(pos > 0.0, 1.0, jnp.where(pos < 0.0, -1.0, 0.0))
    x_comp = compression_length * sign * (
        jnp.log(jnp.abs(pos) + compression_length) - math.log(compression_length))
    z = x_comp * (1.0 / length_scale)          # tan(theta)

    inv = jax.lax.rsqrt(1.0 + z * z)           # cos(theta), (TL, 1)
    cb = inv
    sb = z * inv                               # sin(theta), (TL, 1)

    # Per-frequency bit masks: one half-width lane per frequency f = k + 1, k in [0, half).
    f = jax.lax.broadcasted_iota(jnp.int32, (1, half), 1) + 1
    bit_masks = [(f & (1 << b)) > 0 for b in range(nbits)]   # loop-invariant (1, half) bools

    # Lane-parallel binary exponentiation at half width:
    #   (cr, sr) = (cos(f*theta), sin(f*theta)) = (cos(theta) + i*sin(theta)) ** f
    # First step peeled: result starts as base ** bit0(f).
    cbf = jnp.broadcast_to(cb, (TL, half))     # hoisted lane broadcasts (no CSE in JAX)
    sbf = jnp.broadcast_to(sb, (TL, half))
    m = jnp.broadcast_to(bit_masks[0], (TL, half))
    cr = jnp.where(m, cbf, 1.0)
    sr = jnp.where(m, sbf, 0.0)
    for b in range(1, nbits):
        cb, sb = cb * cb - sb * sb, 2.0 * cb * sb    # square the (TL, 1) base
        cbf = jnp.broadcast_to(cb, (TL, half))
        sbf = jnp.broadcast_to(sb, (TL, half))
        m = jnp.broadcast_to(bit_masks[b], (TL, half))
        cr_new = cr * cbf - sr * sbf
        sr_new = sr * cbf + cr * sbf
        cr = jnp.where(m, cr_new, cr)                # select immediately; no extra live temps
        sr = jnp.where(m, sr_new, sr)

    # Interleave pe[:, 2k] = cr[:, k], pe[:, 2k+1] = sr[:, k] via exact 0/1 permutation
    # matmuls on the otherwise-idle MXU (HIGHEST precision => bit-exact column routing).
    pe = (jnp.dot(cr, p_even_ref[...], precision=jax.lax.Precision.HIGHEST,
                  preferred_element_type=jnp.float32)
          + jnp.dot(sr, p_odd_ref[...], precision=jax.lax.Precision.HIGHEST,
                    preferred_element_type=jnp.float32))

    # pe[:, -1] = 1.0, single fused select before the store.
    lane = jax.lax.broadcasted_iota(jnp.int32, (1, E), 1)
    o_ref[...] = jnp.where(lane == E - 1, 1.0, pe).astype(o_ref.dtype)


def compact_rel_positional_encoding(x, *, embed_dim, length_factor=1.0,
                                    left_context_len=0, row_tile=512):
    """JAX/Pallas equivalent of CompactRelPositionalEncoding.forward (eval mode).

    Args:
      x: (time, batch, *) array; only time = x.shape[0] and x.dtype are used.
      row_tile: target rows per grid step; rounded to the dtype's native sublane tile and
        bounded by a VMEM budget.  Large values amortize per-step overhead.
    Returns:
      positional embedding of shape (1, left_context_len + 2*time - 1, embed_dim).
    """
    assert embed_dim % 2 == 0, embed_dim
    assert length_factor >= 1.0, length_factor
    seq_len = x.shape[0]
    half = embed_dim // 2
    L = left_context_len + 2 * seq_len - 1
    out_dtype = x.dtype

    # Native sublane tile for the output dtype (f32: 8, bf16/f16: 16, int8/fp8: 32).
    sub = {4: 8, 2: 16, 1: 32}.get(jnp.dtype(out_dtype).itemsize, 8)

    # Rows per block: multiple of `sub`; bounded so the output block plus ~12 live (tl, E)
    # f32-equivalent temporaries stay under ~24 MiB (v7x has only 64 MiB VMEM); when L fits
    # a single tile, split in two so both v7x TensorCores get a row block.
    vmem_rows = max(sub, ((24 << 20) // (12 * 4 * embed_dim)) // sub * sub)
    tl = min(_round_up(max(int(row_tile), sub), sub), vmem_rows)
    if L <= tl:
        tl = max(sub, _round_up(pl.cdiv(L, 2), sub))
    grid = (pl.cdiv(L, tl),)                   # ragged last block handled by Pallas

    # Constant 0/1 interleave matrices: cos -> even output columns, sin -> odd columns.
    k = np.arange(half)
    p_even = np.zeros((half, embed_dim), np.float32)
    p_odd = np.zeros((half, embed_dim), np.float32)
    p_even[k, 2 * k] = 1.0
    p_odd[k, 2 * k + 1] = 1.0

    kernel = functools.partial(
        _compact_rel_pe_kernel,
        seq_len=seq_len,
        left_context_len=left_context_len,
        embed_dim=embed_dim,
        length_factor=length_factor,
    )

    pe = pl.pallas_call(
        kernel,
        out_shape=jax.ShapeDtypeStruct((L, embed_dim), out_dtype),
        grid=grid,
        in_specs=[pl.BlockSpec((half, embed_dim), lambda i: (0, 0)),
                  pl.BlockSpec((half, embed_dim), lambda i: (0, 0))],
        out_specs=pl.BlockSpec((tl, embed_dim), lambda i: (i, 0)),
        compiler_params=pltpu.CompilerParams(
            dimension_semantics=("parallel",)),   # rows independent -> megacore on v7x
    )(jnp.asarray(p_even), jnp.asarray(p_odd))
    return pe[None]  # (1, L, embed_dim)


def _reference(x, *, embed_dim, length_factor=1.0, left_context_len=0):
    """Pure-JAX faithful translation of the PyTorch module (atan/cos/sin form)."""
    seq_len = x.shape[0]
    T = seq_len + left_context_len
    p = jnp.arange(-(T - 1), seq_len, dtype=jnp.float32)[:, None]
    freqs = 1.0 + jnp.arange(embed_dim // 2, dtype=jnp.float32)
    C = embed_dim ** 0.5
    x_compressed = C * jnp.sign(p) * (jnp.log(jnp.abs(p) + C) - math.log(C))
    length_scale = length_factor * embed_dim / (2.0 * math.pi)
    x_atan = jnp.arctan(x_compressed / length_scale)
    cosines = jnp.cos(x_atan * freqs)
    sines = jnp.sin(x_atan * freqs)
    pe = jnp.zeros((p.shape[0], embed_dim), jnp.float32)
    pe = pe.at[:, 0::2].set(cosines)
    pe = pe.at[:, 1::2].set(sines)
    pe = pe.at[:, -1].set(1.0)
    return pe[None].astype(x.dtype)


if __name__ == "__main__":
    key = jax.random.PRNGKey(0)
    batch, feat = 2, 32

    # Small config; x contents are irrelevant (module only uses x's length/dtype).
    # L=15 -> two 8-row blocks (exercises the v7x two-block split + ragged tail).
    time, embed_dim = 8, 32
    x = jax.random.normal(key, (time, batch, feat), dtype=jnp.float32)
    out = compact_rel_positional_encoding(x, embed_dim=embed_dim, length_factor=1.0)
    out = jax.block_until_ready(out)
    ref = _reference(x, embed_dim=embed_dim, length_factor=1.0)
    assert out.shape == (1, 2 * time - 1, embed_dim), out.shape
    assert out.dtype == x.dtype, out.dtype
    err = float(jnp.max(jnp.abs(out - ref)))
    assert err < 1e-4, f"max abs err {err}"

    # Larger embed_dim + left context + explicit small row_tile (multi-block, ragged tail).
    time2, lc2, embed2 = 24, 3, 192
    x2 = jax.random.normal(key, (time2, batch, feat), dtype=jnp.float32)
    out2 = compact_rel_positional_encoding(
        x2, embed_dim=embed2, length_factor=1.5, left_context_len=lc2, row_tile=32)
    out2 = jax.block_until_ready(out2)
    ref2 = _reference(x2, embed_dim=embed2, length_factor=1.5, left_context_len=lc2)
    assert out2.shape == (1, lc2 + 2 * time2 - 1, embed2), out2.shape
    err2 = float(jnp.max(jnp.abs(out2 - ref2)))
    assert err2 < 5e-4, f"max abs err {err2}"

    # bf16 output path (16-row native sublane tiles, f32 compute, cast at the final store).
    time3, embed3 = 16, 64
    x3 = jax.random.normal(key, (time3, batch, feat), dtype=jnp.bfloat16)
    out3 = compact_rel_positional_encoding(x3, embed_dim=embed3, length_factor=1.0)
    out3 = jax.block_until_ready(out3)
    ref3 = _reference(x3, embed_dim=embed3, length_factor=1.0)
    assert out3.shape == (1, 2 * time3 - 1, embed3), out3.shape
    assert out3.dtype == jnp.bfloat16, out3.dtype
    err3 = float(jnp.max(jnp.abs(out3.astype(jnp.float32) - ref3.astype(jnp.float32))))
    assert err3 < 2e-2, f"max abs err {err3}"

    print("KERNEL_OK")
</pallas_src>

<mosaic_0001>
module attributes {stable_mosaic.version = 11 : i64} {
  func.func @_compact_rel_pe_kernel(%arg0: i32, %arg1: memref<16x32xf32, #tpu.memory_space<vmem>>, %arg2: memref<16x32xf32, #tpu.memory_space<vmem>>, %arg3: memref<8x32xf32, #tpu.memory_space<vmem>>) attributes {dimension_semantics = [#tpu.dimension_semantics<parallel>], iteration_bounds = array<i64: 2>, scalar_prefetch = 0 : i64, scratch_operands = 0 : i64, tpu.core_type = #tpu.core_type<tc>, window_params = [{pipeline_mode = #tpu.pipeline_mode<synchronous>, transform_indices = @transform_0, window_bounds = array<i64: 16, 32>}, {pipeline_mode = #tpu.pipeline_mode<synchronous>, transform_indices = @transform_1, window_bounds = array<i64: 16, 32>}, {transform_indices = @transform_2, window_bounds = array<i64: 8, 32>}]} {
    %0 = tpu.iota {dimensions = array<i32: 0>} : vector<8x1xi32>
    %c8_i32 = arith.constant 8 : i32
    %1 = arith.muli %arg0, %c8_i32 : i32
    %2 = vector.broadcast %1 : i32 to vector<8x1xi32>
    %3 = arith.addi %0, %2 : vector<8x1xi32>
    %c7_i32 = arith.constant 7 : i32
    %4 = vector.broadcast %c7_i32 : i32 to vector<8x1xi32>
    %5 = arith.subi %3, %4 : vector<8x1xi32>
    %6 = arith.sitofp %5 : vector<8x1xi32> to vector<8x1xf32>
    %cst = arith.constant 0.000000e+00 : f32
    %7 = vector.broadcast %cst : f32 to vector<8x1xf32>
    %8 = arith.cmpf ogt, %6, %7 : vector<8x1xf32>
    %cst_0 = arith.constant 0.000000e+00 : f32
    %9 = vector.broadcast %cst_0 : f32 to vector<8x1xf32>
    %10 = arith.cmpf olt, %6, %9 : vector<8x1xf32>
    %cst_1 = arith.constant -1.000000e+00 : f32
    %cst_2 = arith.constant 0.000000e+00 : f32
    %11 = vector.broadcast %cst_1 : f32 to vector<8x1xf32>
    %12 = vector.broadcast %cst_2 : f32 to vector<8x1xf32>
    %13 = arith.select %10, %11, %12 : vector<8x1xi1>, vector<8x1xf32>
    %cst_3 = arith.constant 1.000000e+00 : f32
    %14 = vector.broadcast %cst_3 : f32 to vector<8x1xf32>
    %15 = arith.select %8, %14, %13 : vector<8x1xi1>, vector<8x1xf32>
    %cst_4 = arith.constant 5.65685415 : f32
    %16 = vector.broadcast %cst_4 : f32 to vector<8x1xf32>
    %17 = arith.mulf %16, %15 : vector<8x1xf32>
    %18 = math.absf %6 : vector<8x1xf32>
    %cst_5 = arith.constant 5.65685415 : f32
    %19 = vector.broadcast %cst_5 : f32 to vector<8x1xf32>
    %20 = arith.addf %18, %19 : vector<8x1xf32>
    %21 = math.log %20 : vector<8x1xf32>
    %cst_6 = arith.constant 1.73286796 : f32
    %22 = vector.broadcast %cst_6 : f32 to vector<8x1xf32>
    %23 = arith.subf %21, %22 : vector<8x1xf32>
    %24 = arith.mulf %17, %23 : vector<8x1xf32>
    %cst_7 = arith.constant 0.196349546 : f32
    %25 = vector.broadcast %cst_7 : f32 to vector<8x1xf32>
    %26 = arith.mulf %24, %25 : vector<8x1xf32>
    %27 = arith.mulf %26, %26 : vector<8x1xf32>
    %cst_8 = arith.constant 1.000000e+00 : f32
    %28 = vector.broadcast %cst_8 : f32 to vector<8x1xf32>
    %29 = arith.addf %28, %27 : vector<8x1xf32>
    %30 = math.rsqrt %29 : vector<8x1xf32>
    %31 = arith.mulf %26, %30 : vector<8x1xf32>
    %32 = tpu.iota {dimensions = array<i32: 1>} : vector<1x16xi32>
    %c1_i32 = arith.constant 1 : i32
    %33 = vector.broadcast %c1_i32 : i32 to vector<1x16xi32>
    %34 = arith.addi %32, %33 : vector<1x16xi32>
    %c1_i32_9 = arith.constant 1 : i32
    %35 = vector.broadcast %c1_i32_9 : i32 to vector<1x16xi32>
    %36 = arith.andi %34, %35 : vector<1x16xi32>
    %c0_i32 = arith.constant 0 : i32
    %37 = vector.broadcast %c0_i32 : i32 to vector<1x16xi32>
    %38 = arith.cmpi sgt, %36, %37 : vector<1x16xi32>
    %c2_i32 = arith.constant 2 : i32
    %39 = vector.broadcast %c2_i32 : i32 to vector<1x16xi32>
    %40 = arith.andi %34, %39 : vector<1x16xi32>
    %c0_i32_10 = arith.constant 0 : i32
    %41 = vector.broadcast %c0_i32_10 : i32 to vector<1x16xi32>
    %42 = arith.cmpi sgt, %40, %41 : vector<1x16xi32>
    %c4_i32 = arith.constant 4 : i32
    %43 = vector.broadcast %c4_i32 : i32 to vector<1x16xi32>
    %44 = arith.andi %34, %43 : vector<1x16xi32>
    %c0_i32_11 = arith.constant 0 : i32
    %45 = vector.broadcast %c0_i32_11 : i32 to vector<1x16xi32>
    %46 = arith.cmpi sgt, %44, %45 : vector<1x16xi32>
    %c8_i32_12 = arith.constant 8 : i32
    %47 = vector.broadcast %c8_i32_12 : i32 to vector<1x16xi32>
    %48 = arith.andi %34, %47 : vector<1x16xi32>
    %c0_i32_13 = arith.constant 0 : i32
    %49 = vector.broadcast %c0_i32_13 : i32 to vector<1x16xi32>
    %50 = arith.cmpi sgt, %48, %49 : vector<1x16xi32>
    %c16_i32 = arith.constant 16 : i32
    %51 = vector.broadcast %c16_i32 : i32 to vector<1x16xi32>
    %52 = arith.andi %34, %51 : vector<1x16xi32>
    %c0_i32_14 = arith.constant 0 : i32
    %53 = vector.broadcast %c0_i32_14 : i32 to vector<1x16xi32>
    %54 = arith.cmpi sgt, %52, %53 : vector<1x16xi32>
    %55 = vector.shape_cast %30 : vector<8x1xf32> to vector<8x1xf32>
    %56 = vector.broadcast %55 : vector<8x1xf32> to vector<8x16xf32>
    %57 = vector.shape_cast %31 : vector<8x1xf32> to vector<8x1xf32>
    %58 = vector.broadcast %57 : vector<8x1xf32> to vector<8x16xf32>
    %59 = vector.shape_cast %38 : vector<1x16xi1> to vector<1x16xi1>
    %60 = vector.broadcast %59 : vector<1x16xi1> to vector<8x16xi1>
    %cst_15 = arith.constant 1.000000e+00 : f32
    %61 = vector.broadcast %cst_15 : f32 to vector<8x16xf32>
    %62 = arith.select %60, %56, %61 : vector<8x16xi1>, vector<8x16xf32>
    %cst_16 = arith.constant 0.000000e+00 : f32
    %63 = vector.broadcast %cst_16 : f32 to vector<8x16xf32>
    %64 = arith.select %60, %58, %63 : vector<8x16xi1>, vector<8x16xf32>
    %65 = arith.mulf %30, %30 : vector<8x1xf32>
    %66 = arith.mulf %31, %31 : vector<8x1xf32>
    %67 = arith.subf %65, %66 : vector<8x1xf32>
    %cst_17 = arith.constant 2.000000e+00 : f32
    %68 = vector.broadcast %cst_17 : f32 to vector<8x1xf32>
    %69 = arith.mulf %68, %30 : vector<8x1xf32>
    %70 = arith.mulf %69, %31 : vector<8x1xf32>
    %71 = vector.shape_cast %67 : vector<8x1xf32> to vector<8x1xf32>
    %72 = vector.broadcast %71 : vector<8x1xf32> to vector<8x16xf32>
    %73 = vector.shape_cast %70 : vector<8x1xf32> to vector<8x1xf32>
    %74 = vector.broadcast %73 : vector<8x1xf32> to vector<8x16xf32>
    %75 = vector.shape_cast %42 : vector<1x16xi1> to vector<1x16xi1>
    %76 = vector.broadcast %75 : vector<1x16xi1> to vector<8x16xi1>
    %77 = arith.mulf %62, %72 : vector<8x16xf32>
    %78 = arith.mulf %64, %74 : vector<8x16xf32>
    %79 = arith.subf %77, %78 : vector<8x16xf32>
    %80 = arith.mulf %64, %72 : vector<8x16xf32>
    %81 = arith.mulf %62, %74 : vector<8x16xf32>
    %82 = arith.addf %80, %81 : vector<8x16xf32>
    %83 = arith.select %76, %79, %62 : vector<8x16xi1>, vector<8x16xf32>
    %84 = arith.select %76, %82, %64 : vector<8x16xi1>, vector<8x16xf32>
    %85 = arith.mulf %67, %67 : vector<8x1xf32>
    %86 = arith.mulf %70, %70 : vector<8x1xf32>
    %87 = arith.subf %85, %86 : vector<8x1xf32>
    %cst_18 = arith.constant 2.000000e+00 : f32
    %88 = vector.broadcast %cst_18 : f32 to vector<8x1xf32>
    %89 = arith.mulf %88, %67 : vector<8x1xf32>
    %90 = arith.mulf %89, %70 : vector<8x1xf32>
    %91 = vector.shape_cast %87 : vector<8x1xf32> to vector<8x1xf32>
    %92 = vector.broadcast %91 : vector<8x1xf32> to vector<8x16xf32>
    %93 = vector.shape_cast %90 : vector<8x1xf32> to vector<8x1xf32>
    %94 = vector.broadcast %93 : vector<8x1xf32> to vector<8x16xf32>
    %95 = vector.shape_cast %46 : vector<1x16xi1> to vector<1x16xi1>
    %96 = vector.broadcast %95 : vector<1x16xi1> to vector<8x16xi1>
    %97 = arith.mulf %83, %92 : vector<8x16xf32>
    %98 = arith.mulf %84, %94 : vector<8x16xf32>
    %99 = arith.subf %97, %98 : vector<8x16xf32>
    %100 = arith.mulf %84, %92 : vector<8x16xf32>
    %101 = arith.mulf %83, %94 : vector<8x16xf32>
    %102 = arith.addf %100, %101 : vector<8x16xf32>
    %103 = arith.select %96, %99, %83 : vector<8x16xi1>, vector<8x16xf32>
    %104 = arith.select %96, %102, %84 : vector<8x16xi1>, vector<8x16xf32>
    %105 = arith.mulf %87, %87 : vector<8x1xf32>
    %106 = arith.mulf %90, %90 : vector<8x1xf32>
    %107 = arith.subf %105, %106 : vector<8x1xf32>
    %cst_19 = arith.constant 2.000000e+00 : f32
    %108 = vector.broadcast %cst_19 : f32 to vector<8x1xf32>
    %109 = arith.mulf %108, %87 : vector<8x1xf32>
    %110 = arith.mulf %109, %90 : vector<8x1xf32>
    %111 = vector.shape_cast %107 : vector<8x1xf32> to vector<8x1xf32>
    %112 = vector.broadcast %111 : vector<8x1xf32> to vector<8x16xf32>
    %113 = vector.shape_cast %110 : vector<8x1xf32> to vector<8x1xf32>
    %114 = vector.broadcast %113 : vector<8x1xf32> to vector<8x16xf32>
    %115 = vector.shape_cast %50 : vector<1x16xi1> to vector<1x16xi1>
    %116 = vector.broadcast %115 : vector<1x16xi1> to vector<8x16xi1>
    %117 = arith.mulf %103, %112 : vector<8x16xf32>
    %118 = arith.mulf %104, %114 : vector<8x16xf32>
    %119 = arith.subf %117, %118 : vector<8x16xf32>
    %120 = arith.mulf %104, %112 : vector<8x16xf32>
    %121 = arith.mulf %103, %114 : vector<8x16xf32>
    %122 = arith.addf %120, %121 : vector<8x16xf32>
    %123 = arith.select %116, %119, %103 : vector<8x16xi1>, vector<8x16xf32>
    %124 = arith.select %116, %122, %104 : vector<8x16xi1>, vector<8x16xf32>
    %125 = arith.mulf %107, %107 : vector<8x1xf32>
    %126 = arith.mulf %110, %110 : vector<8x1xf32>
    %127 = arith.subf %125, %126 : vector<8x1xf32>
    %cst_20 = arith.constant 2.000000e+00 : f32
    %128 = vector.broadcast %cst_20 : f32 to vector<8x1xf32>
    %129 = arith.mulf %128, %107 : vector<8x1xf32>
    %130 = arith.mulf %129, %110 : vector<8x1xf32>
    %131 = vector.shape_cast %127 : vector<8x1xf32> to vector<8x1xf32>
    %132 = vector.broadcast %131 : vector<8x1xf32> to vector<8x16xf32>
    %133 = vector.shape_cast %130 : vector<8x1xf32> to vector<8x1xf32>
    %134 = vector.broadcast %133 : vector<8x1xf32> to vector<8x16xf32>
    %135 = vector.shape_cast %54 : vector<1x16xi1> to vector<1x16xi1>
    %136 = vector.broadcast %135 : vector<1x16xi1> to vector<8x16xi1>
    %137 = arith.mulf %123, %132 : vector<8x16xf32>
    %138 = arith.mulf %124, %134 : vector<8x16xf32>
    %139 = arith.subf %137, %138 : vector<8x16xf32>
    %140 = arith.mulf %124, %132 : vector<8x16xf32>
    %141 = arith.mulf %123, %134 : vector<8x16xf32>
    %142 = arith.addf %140, %141 : vector<8x16xf32>
    %143 = arith.select %136, %139, %123 : vector<8x16xi1>, vector<8x16xf32>
    %144 = arith.select %136, %142, %124 : vector<8x16xi1>, vector<8x16xf32>
    %c0 = arith.constant 0 : index
    %c0_21 = arith.constant 0 : index
    %145 = vector.load %arg1[%c0, %c0_21] : memref<16x32xf32, #tpu.memory_space<vmem>>, vector<16x32xf32>
    %cst_22 = arith.constant dense<0.000000e+00> : vector<8x32xf32>
    %146 = tpu.matmul %143, %145, %cst_22 {dimension_numbers = #tpu.dot_dimension_numbers<[1], [0], [0], [1], [0, 0, 1, 1], [], []>, precision = #tpu.contract_precision<fp32>} : vector<8x16xf32>, vector<16x32xf32>, vector<8x32xf32> -> vector<8x32xf32>
    %c0_23 = arith.constant 0 : index
    %c0_24 = arith.constant 0 : index
    %147 = vector.load %arg2[%c0_23, %c0_24] : memref<16x32xf32, #tpu.memory_space<vmem>>, vector<16x32xf32>
    %cst_25 = arith.constant dense<0.000000e+00> : vector<8x32xf32>
    %148 = tpu.matmul %144, %147, %cst_25 {dimension_numbers = #tpu.dot_dimension_numbers<[1], [0], [0], [1], [0, 0, 1, 1], [], []>, precision = #tpu.contract_precision<fp32>} : vector<8x16xf32>, vector<16x32xf32>, vector<8x32xf32> -> vector<8x32xf32>
    %149 = arith.addf %146, %148 : vector<8x32xf32>
    %150 = tpu.iota {dimensions = array<i32: 1>} : vector<1x32xi32>
    %c31_i32 = arith.constant 31 : i32
    %151 = vector.broadcast %c31_i32 : i32 to vector<1x32xi32>
    %152 = arith.cmpi eq, %150, %151 : vector<1x32xi32>
    %cst_26 = arith.constant 1.000000e+00 : f32
    %153 = vector.shape_cast %152 : vector<1x32xi1> to vector<1x32xi1>
    %154 = vector.broadcast %153 : vector<1x32xi1> to vector<8x32xi1>
    %155 = vector.broadcast %cst_26 : f32 to vector<8x32xf32>
    %156 = arith.select %154, %155, %149 : vector<8x32xi1>, vector<8x32xf32>
    %c0_27 = arith.constant 0 : index
    %c0_28 = arith.constant 0 : index
    %157 = vector.load %arg3[%c0_27, %c0_28] : memref<8x32xf32, #tpu.memory_space<vmem>>, vector<8x32xf32>
    tpu.vector_store %arg3[%c0_27, %c0_28], %156 {strides = array<i32>} : memref<8x32xf32, #tpu.memory_space<vmem>>, vector<8x32xf32>,
    return
  }
  func.func @transform_0(%arg0: i32) -> (i32, i32) {
    %c0_i32 = arith.constant 0 : i32
    %c0_i32_0 = arith.constant 0 : i32
    %c0_i32_1 = arith.constant 0 : i32
    return %c0_i32, %c0_i32_0 : i32, i32
  }
  func.func @transform_1(%arg0: i32) -> (i32, i32) {
    %c0_i32 = arith.constant 0 : i32
    %c0_i32_0 = arith.constant 0 : i32
    %c0_i32_1 = arith.constant 0 : i32
    return %c0_i32, %c0_i32_0 : i32, i32
  }
  func.func @transform_2(%arg0: i32) -> (i32, i32) {
    %c0_i32 = arith.constant 0 : i32
    %c0_i32_0 = arith.constant 0 : i32
    return %arg0, %c0_i32 : i32, i32
  }
}

</mosaic_0001>

<llo_original>
// kernel: tpu_custom_call.1
$region0: #{tpu_custom_call.1}
  #allocation0 [shape = 'u32[]', space=smem, size = 0x4, offset = 0x4, fixed_abs, tag = 'smem constant byte address 0x4 - core index']
  #allocation1 [shape = 'u32[144,128]{1,0:T(1,128)}', space=vmem, size = 0x12000, scoped, tag = 'internal scratch']
  %s0 = inlined_call_operand.hbm [shape: f32[16,32], index: 0, kind: input, shape index: {}]
  %s1 = inlined_call_operand.hbm [shape: f32[16,32], index: 1, kind: input, shape index: {}]
  %s2 = inlined_call_operand.hbm [shape: f32[15,32], index: 2, kind: output, shape index: {}]
  %s3 = sld [smem:[#allocation0]]
  $region49: #{tpu_custom_call.1} parent=0
    _
  %s5 = ssub.s32 1, %s3
  %s6 = scalar_select 0, %s5, %s3
  $region1: #{tpu_custom_call.1} parent=0
    #allocation2 [shape = 'u8[8192]{0}', space=vmem, size = 0x2000, scoped, tag = 'input window, operand 0, single buffered']
    #allocation3 [shape = 's32[2]{0}', space=sflag, size = 0x8, scoped, tag = 'scoped memory for tpu_custom_call.1']
    #allocation4 [shape = 's32[2]{0}', space=sflag, size = 0x8, scoped, tag = 'scoped memory for tpu_custom_call.1']
    #allocation5 [shape = 'u8[8192]{0}', space=vmem, size = 0x2000, scoped, tag = 'input window, operand 1, single buffered']
    #allocation6 [shape = 's32[1]{0}', space=sflag, size = 0x4, scoped, tag = 'scoped memory for tpu_custom_call.1']
    #allocation7 [shape = 'u8[8192]{0}', space=vmem, size = 0x2000, scoped, tag = 'output window, operand 0']
    %7 = vsyncpa [#allocation3], 0
    %8 = vsyncpa [#allocation6], 0
    %9 = vsyncpa [#allocation4], 0
    %s10 = scalar_lea.sflag [#allocation4], 1
    %11 = vsyncpa %s10, 0
    loop: start=0, step=1, limit=4
    $region2: #{tpu_custom_call.1} parent=1 // loop_pre_header
      _
    $region3: #{tpu_custom_call.1} parent=1 // loop_header
      %s13 = sphi 0, %s17
      %p14 = scmp.ge.s32.totalorder %s13, 4
      %s21 = sphi 0, %s21
      %s23 = sphi 0, %s21
      %s24 = sphi 0, %s23
      %s38 = sphi 0, %s24
      %s42 = sphi 0, %s42
      %s44 = sphi 0, %s42
      %s45 = sphi 0, %s44
      %s59 = sphi 0, %s45
      %s65 = sphi 0, %s67
      %s68 = sphi 0, %s65
      %s69 = sphi 0, %s68
      %s85 = sphi 0, %s69
    $region4: #{tpu_custom_call.1} parent=1 // loop_header_branch
      %16 = sbr.rel (%p14) target = $region8
    $region5: #{tpu_custom_call.1} parent=1 // loop_body
      %s18 = ssub.s32 %s13, 1
      %s19 = ssub.s32 %s13, 2
      %s20 = sadd.s32 %s13, 1
      %s22 = sadd.s32 %s21, 1
      %p25 = scmp.eq.s32.totalorder %s13, 1
      %p26 = scmp.ne.s32.totalorder %s21, %s23
      %p27 = scmp.eq.s32.totalorder %s13, 0
      %p28 = por %p26, %p27
      %p29 = scmp.ne.s32.totalorder %s21, %s23
      %p30 = scmp.eq.s32.totalorder %s18, 1
      %p31 = por %p29, %p30
      %p32 = scmp.ne.s32.totalorder %s23, %s24
      %p33 = scmp.eq.s32.totalorder %s18, 0
      %p34 = por %p32, %p33
      %p35 = scmp.ne.s32.totalorder %s23, %s24
      %p36 = scmp.eq.s32.totalorder %s19, 1
      %p37 = por %p35, %p36
      %p39 = scmp.ne.s32.totalorder %s24, %s38
      %p40 = scmp.eq.s32.totalorder %s19, 0
      %p41 = por %p39, %p40
      %s43 = sadd.s32 %s42, 1
      %p46 = scmp.eq.s32.totalorder %s13, 1
      %p47 = scmp.ne.s32.totalorder %s42, %s44
      %p48 = scmp.eq.s32.totalorder %s13, 0
      %p49 = por %p47, %p48
      %p50 = scmp.ne.s32.totalorder %s42, %s44
      %p51 = scmp.eq.s32.totalorder %s18, 1
      %p52 = por %p50, %p51
      %p53 = scmp.ne.s32.totalorder %s44, %s45
      %p54 = scmp.eq.s32.totalorder %s18, 0
      %p55 = por %p53, %p54
      %p56 = scmp.ne.s32.totalorder %s44, %s45
      %p57 = scmp.eq.s32.totalorder %s19, 1
      %p58 = por %p56, %p57
      %p60 = scmp.ne.s32.totalorder %s45, %s59
      %p61 = scmp.eq.s32.totalorder %s19, 0
      %p62 = por %p60, %p61
      %s63 = ssub.s32 %s13, %s20
      %p64 = scmp.eq.s32.totalorder %s63, 0
      %s66 = sadd.s32 %s65, 1
      %s67 = scalar_select %p64, %s65, %s66
      %p70 = pneg %p64
      %p71 = scmp.eq.s32.totalorder %s13, 1
      %p72 = por %p70, %p71
      %p73 = scmp.ne.s32.totalorder %s65, %s68
      %p74 = scmp.eq.s32.totalorder %s13, 0
      %p75 = por %p73, %p74
      %p76 = scmp.ne.s32.totalorder %s65, %s68
      %p77 = scmp.eq.s32.totalorder %s18, 1
      %p78 = por %p76, %p77
      %p79 = scmp.ne.s32.totalorder %s68, %s69
      %p80 = scmp.eq.s32.totalorder %s18, 0
      %p81 = por %p79, %p80
      %p82 = scmp.ne.s32.totalorder %s68, %s69
      %p83 = scmp.eq.s32.totalorder %s19, 1
      %p84 = por %p82, %p83
      %p86 = scmp.ne.s32.totalorder %s69, %s85
      %p87 = scmp.eq.s32.totalorder %s19, 0
      %p88 = por %p86, %p87
      %p89 = scmp.le.s32.totalorder 1, %s13
      %p90 = scmp.lt.s32.totalorder %s13, 3
      %p91 = pnand %p89, %p90
      %p92 = pneg %p91
      // Predicated region
      $region9: #{tpu_custom_call.1} parent=5 // pred_check
        _
      $region10: #{tpu_custom_call.1} parent=5 // pred_check_branch
        %94 = sbr.rel (%p91) target = $region12
      $region11: #{tpu_custom_call.1} parent=5 // pred_region
        %s95 = ssub.s32 %s13, 1
        // Predicated region
        $region13: #{tpu_custom_call.1} parent=11 // pred_check
          %p96 = pneg %p34
        $region14: #{tpu_custom_call.1} parent=11 // pred_check_branch
          %98 = sbr.rel (%p96) target = $region16
        $region15: #{tpu_custom_call.1} parent=11 // pred_region
          %s100 = ssub.s32 256, 256
          %101 = vsyncadd [#allocation3], %s100
          %s102 = sshll.u32 [#allocation2], 4
          %s103 = int_to_ptr.vmem [resolvable:$true] %s102
          %108 = dma.hbm_to_vmem [thread:$0]  %s0, 256, %s103, [#allocation3], 128, 128, 8
        $region16: #{tpu_custom_call.1} parent=11 // pred_fallthru
          _
        // Predicated region
        $region17: #{tpu_custom_call.1} parent=11 // pred_check
          %p109 = pneg %p55
        $region18: #{tpu_custom_call.1} parent=11 // pred_check_branch
          %111 = sbr.rel (%p109) target = $region20
        $region19: #{tpu_custom_call.1} parent=11 // pred_region
          %s113 = ssub.s32 256, 256
          %114 = vsyncadd [#allocation6], %s113
          %s115 = sshll.u32 [#allocation5], 4
          %s116 = int_to_ptr.vmem [resolvable:$true] %s115
          %121 = dma.hbm_to_vmem [thread:$0]  %s1, 256, %s116, [#allocation6], 128, 128, 8
        $region20: #{tpu_custom_call.1} parent=11 // pred_fallthru
          _
      $region12: #{tpu_custom_call.1} parent=5 // pred_fallthru
        _
      %p122 = scmp.lt.s32.totalorder %s13, 2
      // Predicated region
      $region21: #{tpu_custom_call.1} parent=5 // pred_check
        %p123 = pneg %p122
      $region22: #{tpu_custom_call.1} parent=5 // pred_check_branch
        %125 = sbr.rel (%p123) target = $region24
      $region23: #{tpu_custom_call.1} parent=5 // pred_region
        _
      $region24: #{tpu_custom_call.1} parent=5 // pred_fallthru
        _
      %p126 = scmp.le.s32.totalorder 1, %s13
      %p127 = scmp.lt.s32.totalorder %s13, 3
      %p128 = pnand %p126, %p127
      %p129 = pneg %p128
      // Predicated region
      $region25: #{tpu_custom_call.1} parent=5 // pred_check
        _
      $region26: #{tpu_custom_call.1} parent=5 // pred_check_branch
        %131 = sbr.rel (%p128) target = $region28
      $region27: #{tpu_custom_call.1} parent=5 // pred_region
        %s132 = ssub.s32 %s13, 1
        // Predicated region
        $region29: #{tpu_custom_call.1} parent=27 // pred_check
          %p133 = pneg %p34
        $region30: #{tpu_custom_call.1} parent=27 // pred_check_branch
          %135 = sbr.rel (%p133) target = $region32
        $region31: #{tpu_custom_call.1} parent=27 // pred_region
          %136 = dma.done [#allocation3], 256
        $region32: #{tpu_custom_call.1} parent=27 // pred_fallthru
          _
        // Predicated region
        $region33: #{tpu_custom_call.1} parent=27 // pred_check
          %p137 = pneg %p55
        $region34: #{tpu_custom_call.1} parent=27 // pred_check_branch
          %139 = sbr.rel (%p137) target = $region36
        $region35: #{tpu_custom_call.1} parent=27 // pred_region
          %140 = dma.done [#allocation6], 256
        $region36: #{tpu_custom_call.1} parent=27 // pred_fallthru
          _
        %p141 = pneg %p34
        %p142 = pneg %p31
        %p143 = pneg %p55
        %p144 = pneg %p52
        %p145 = pneg %p81
        %p146 = pneg %p78
        %s147 = sand.u32 %s68, 1
        %s148 = scalar_lea.sflag [#allocation4], %s147
        %s149 = sand.u32 %s68, 1
        %s150 = smul.addr %s149, 8
        %s151 = scalar_lea.vmem [#allocation7], %s150
        %v152 = vlaneseq
        %v153 = vshrl.u32 %v152, 7
        %s154 = smul.u32 %s18, 8
        %v155 = vstv %s154
        %v156 = vadd.s32 %v153, %v155
        %v157 = vsub.s32 %v156, 7
        %v158 = vcvt.s32.f32 %v157
        %vm159 = vcmp.gt.f32.partialorder %v158, 0.0
        %vm160 = vcmp.lt.f32.partialorder %v158, 0.0
        %v161 = vsel %vm160, -1.0, 0.0
        %v162 = vsel %vm159, 1.0, %v161
        %v163 = vmul.f32 %v162, 5.656854
        %v164 = vand.u32 2147483647, %v158
        %v165 = vadd.f32 %v164, 5.656854
        %v166 = vlog2.pop %v165
        %v167 = vmul.f32 %v166, 0.6931472
        %v168 = vsub.f32 %v167, 1.732868
        %v169 = vmul.f32 %v163, %v168
        %v170 = vmul.f32 %v169, 0.19634955
        %v171 = vmul.f32 %v170, %v170
        %v172 = vadd.f32 %v171, 1.0
        %v173 = vrsqrt.pop %v172
        %v174 = vmul.f32 %v170, %v173
        %v175 = vlaneseq
        %v176 = vand.u32 %v175, 127
        %v177 = vadd.s32 %v176, 1
        %v178 = vand.u32 %v177, 1
        %vm179 = vcmp.gt.s32.totalorder %v178, 0
        %v180 = vand.u32 %v177, 2
        %vm181 = vcmp.gt.s32.totalorder %v180, 0
        %v182 = vand.u32 %v177, 4
        %vm183 = vcmp.gt.s32.totalorder %v182, 0
        %v184 = vand.u32 %v177, 8
        %vm185 = vcmp.gt.s32.totalorder %v184, 0
        %v186 = vand.u32 %v177, 16
        %vm187 = vcmp.gt.s32.totalorder %v186, 0
        %v188 = vsel %vm179, 1, 0
        %vm189 = vcmp.eq.s32.totalorder %v188, 1
        %v190 = vsel %vm189, %v173, 1.0
        %v191 = vsel %vm189, %v174, 0.0
        %v192 = vmul.f32 %v173, %v173
        %v193 = vmul.f32 %v174, %v174
        %v194 = vsub.f32 %v192, %v193
        %v195 = vmul.f32 %v173, 2.0
        %v196 = vmul.f32 %v195, %v174
        %v197 = vsel %vm181, 1, 0
        %vm198 = vcmp.eq.s32.totalorder %v197, 1
        %v199 = vmul.f32 %v190, %v194
        %v200 = vmul.f32 %v191, %v196
        %v201 = vsub.f32 %v199, %v200
        %v202 = vmul.f32 %v191, %v194
        %v203 = vmul.f32 %v190, %v196
        %v204 = vadd.f32 %v202, %v203
        %v205 = vsel %vm198, %v201, %v190
        %v206 = vsel %vm198, %v204, %v191
        %v207 = vmul.f32 %v194, %v194
        %v208 = vmul.f32 %v196, %v196
        %v209 = vsub.f32 %v207, %v208
        %v210 = vmul.f32 %v194, 2.0
        %v211 = vmul.f32 %v210, %v196
        %v212 = vsel %vm183, 1, 0
        %vm213 = vcmp.eq.s32.totalorder %v212, 1
        %v214 = vmul.f32 %v205, %v209
        %v215 = vmul.f32 %v206, %v211
        %v216 = vsub.f32 %v214, %v215
        %v217 = vmul.f32 %v206, %v209
        %v218 = vmul.f32 %v205, %v211
        %v219 = vadd.f32 %v217, %v218
        %v220 = vsel %vm213, %v216, %v205
        %v221 = vsel %vm213, %v219, %v206
        %v222 = vmul.f32 %v209, %v209
        %v223 = vmul.f32 %v211, %v211
        %v224 = vsub.f32 %v222, %v223
        %v225 = vmul.f32 %v209, 2.0
        %v226 = vmul.f32 %v225, %v211
        %v227 = vsel %vm185, 1, 0
        %vm228 = vcmp.eq.s32.totalorder %v227, 1
        %v229 = vmul.f32 %v220, %v224
        %v230 = vmul.f32 %v221, %v226
        %v231 = vsub.f32 %v229, %v230
        %v232 = vmul.f32 %v221, %v224
        %v233 = vmul.f32 %v220, %v226
        %v234 = vadd.f32 %v232, %v233
        %v235 = vsel %vm228, %v231, %v220
        %v236 = vsel %vm228, %v234, %v221
        %v237 = vmul.f32 %v224, %v224
        %v238 = vmul.f32 %v226, %v226
        %v239 = vsub.f32 %v237, %v238
        %v240 = vmul.f32 %v224, 2.0
        %v241 = vmul.f32 %v240, %v226
        %v242 = vsel %vm187, 1, 0
        %vm243 = vcmp.eq.s32.totalorder %v242, 1
        %v244 = vmul.f32 %v235, %v239
        %v245 = vmul.f32 %v236, %v241
        %v246 = vsub.f32 %v244, %v245
        %v247 = vmul.f32 %v236, %v239
        %v248 = vmul.f32 %v235, %v241
        %v249 = vadd.f32 %v247, %v248
        %v250 = vsel %vm243, %v246, %v235
        %v251 = vsel %vm243, %v249, %v236
        %v252 = vld [vmem:[#allocation2] sm:$0xff]
        %v253 = vld [vmem:[#allocation2 + $0x8] sm:$0xff]
        %v254 = vld [vmem:[#allocation5] sm:$0xff]
        %v255 = vld [vmem:[#allocation5 + $0x8] sm:$0xff]
        %vm256 = vcmask 130048
        %v258 = vsel %vm256, %v251, 0
        %260 = vmatprep.subr.mxu0 0.0
        %261 = vmatpush1.msra.mxu0 0.0
        %262 = vmatprep.subr.mxu0 0.0
        %263 = vmatpush1.msra.mxu0 0.0
        %264 = vmatprep.subr.mxu0 0.0
        %265 = vmatpush1.msra.mxu0 0.0
        %266 = vmatprep.subr.mxu0 0.0
        %267 = vmatpush1.msra.mxu0 0.0
        %268 = vmatprep.subr.mxu0 0.0
        %269 = vmatpush1.msra.mxu0 0.0
        %270 = vmatprep.subr.mxu0 0.0
        %271 = vmatpush1.msra.mxu0 0.0
        %272 = vmatprep.subr.mxu0 0.0
        %273 = vmatpush1.msra.mxu0 0.0
        %274 = vmatprep.subr.mxu0 0.0
        %275 = vmatpush1.msra.mxu0 0.0
        %276 = vmatprep.subr.mxu0 0.0
        %277 = vmatpush1.msra.mxu0 0.0
        %278 = vmatprep.subr.mxu0 0.0
        %279 = vmatpush1.msra.mxu0 0.0
        %280 = vmatprep.subr.mxu0 0.0
        %281 = vmatpush1.msra.mxu0 0.0
        %282 = vmatprep.subr.mxu0 0.0
        %283 = vmatpush1.msra.mxu0 0.0
        %284 = vmatprep.subr.mxu0 0.0
        %285 = vmatpush1.msra.mxu0 0.0
        %286 = vmatprep.subr.mxu0 0.0
        %287 = vmatpush1.msra.mxu0 0.0
        %288 = vmatprep.subr.mxu0 0.0
        %v289 = vand.u32 %v255, 4294901760
        %290 = vmatpush1.msra.mxu0 %v289
        %291 = vmatprep.subr.mxu0 0.0
        %v292 = vand.u32 %v254, 4294901760
        %293 = vmatpush1.msra.mxu0 %v292
        %294 = vmatprep.subr.mxu0 0.0
        %295 = vmatpush2.msra.mxu0 0.0
        %296 = vmatprep.subr.mxu0 0.0
        %297 = vmatpush2.msra.mxu0 0.0
        %298 = vmatprep.subr.mxu0 0.0
        %299 = vmatpush2.msra.mxu0 0.0
        %300 = vmatprep.subr.mxu0 0.0
        %301 = vmatpush2.msra.mxu0 0.0
        %302 = vmatprep.subr.mxu0 0.0
        %303 = vmatpush2.msra.mxu0 0.0
        %304 = vmatprep.subr.mxu0 0.0
        %305 = vmatpush2.msra.mxu0 0.0
        %306 = vmatprep.subr.mxu0 0.0
        %307 = vmatpush2.msra.mxu0 0.0
        %308 = vmatprep.subr.mxu0 0.0
        %309 = vmatpush2.msra.mxu0 0.0
        %310 = vmatprep.subr.mxu0 0.0
        %311 = vmatpush2.msra.mxu0 0.0
        %312 = vmatprep.subr.mxu0 0.0
        %313 = vmatpush2.msra.mxu0 0.0
        %314 = vmatprep.subr.mxu0 0.0
        %315 = vmatpush2.msra.mxu0 0.0
        %316 = vmatprep.subr.mxu0 0.0
        %317 = vmatpush2.msra.mxu0 0.0
        %318 = vmatprep.subr.mxu0 0.0
        %319 = vmatpush2.msra.mxu0 0.0
        %320 = vmatprep.subr.mxu0 0.0
        %321 = vmatpush2.msra.mxu0 0.0
        %322 = vmatprep.subr.mxu0 0.0
        %323 = vmatpush2.msra.mxu0 0.0
        %324 = vmatprep.subr.mxu0 0.0
        %325 = vmatpush2.msra.mxu0 0.0
        %326 = vmatprep.mubr.f32.mxu0 0.0
        %v327 = vand.u32 %v258, 4294901760
        %v328 = vsub.f32 %v258, %v327
        %v329 = vand.u32 %v328, 4294901760
        %v330 = vsub.f32 %v328, %v329
        %v331 = vand.u32 %v330, 4294901760
        %332 = vmatmul.mubr.f32.gmra.mxu0 %v331
        %v333 = vpop.f32.mrf.mxu0
        %v334 = vadd.f32 0.0, %v333
        %v335 = vpop.f32.mrf.mxu0
        %336 = vdwg.mxu0
        %337 = vmatprep.subr.mxu0 0.0
        %338 = vmatpush1.msra.mxu0 0.0
        %339 = vmatprep.subr.mxu0 0.0
        %340 = vmatpush1.msra.mxu0 0.0
        %341 = vmatprep.subr.mxu0 0.0
        %342 = vmatpush1.msra.mxu0 0.0
        %343 = vmatprep.subr.mxu0 0.0
        %344 = vmatpush1.msra.mxu0 0.0
        %345 = vmatprep.subr.mxu0 0.0
        %346 = vmatpush1.msra.mxu0 0.0
        %347 = vmatprep.subr.mxu0 0.0
        %348 = vmatpush1.msra.mxu0 0.0
        %349 = vmatprep.subr.mxu0 0.0
        %350 = vmatpush1.msra.mxu0 0.0
        %351 = vmatprep.subr.mxu0 0.0
        %352 = vmatpush1.msra.mxu0 0.0
        %353 = vmatprep.subr.mxu0 0.0
        %354 = vmatpush1.msra.mxu0 0.0
        %355 = vmatprep.subr.mxu0 0.0
        %356 = vmatpush1.msra.mxu0 0.0
        %357 = vmatprep.subr.mxu0 0.0
        %358 = vmatpush1.msra.mxu0 0.0
        %359 = vmatprep.subr.mxu0 0.0
        %360 = vmatpush1.msra.mxu0 0.0
        %361 = vmatprep.subr.mxu0 0.0
        %362 = vmatpush1.msra.mxu0 0.0
        %363 = vmatprep.subr.mxu0 0.0
        %364 = vmatpush1.msra.mxu0 0.0
        %365 = vmatprep.subr.mxu0 0.0
        %v366 = vand.u32 %v255, 4294901760
        %v367 = vsub.f32 %v255, %v366
        %v368 = vand.u32 %v367, 4294901760
        %v369 = vsub.f32 %v367, %v368
        %v370 = vand.u32 %v369, 4294901760
        %371 = vmatpush1.msra.mxu0 %v370
        %372 = vmatprep.subr.mxu0 0.0
        %v373 = vand.u32 %v254, 4294901760
        %v374 = vsub.f32 %v254, %v373
        %v375 = vand.u32 %v374, 4294901760
        %v376 = vsub.f32 %v374, %v375
        %v377 = vand.u32 %v376, 4294901760
        %378 = vmatpush1.msra.mxu0 %v377
        %379 = vmatprep.subr.mxu0 0.0
        %380 = vmatpush2.msra.mxu0 0.0
        %381 = vmatprep.subr.mxu0 0.0
        %382 = vmatpush2.msra.mxu0 0.0
        %383 = vmatprep.subr.mxu0 0.0
        %384 = vmatpush2.msra.mxu0 0.0
        %385 = vmatprep.subr.mxu0 0.0
        %386 = vmatpush2.msra.mxu0 0.0
        %387 = vmatprep.subr.mxu0 0.0
        %388 = vmatpush2.msra.mxu0 0.0
        %389 = vmatprep.subr.mxu0 0.0
        %390 = vmatpush2.msra.mxu0 0.0
        %391 = vmatprep.subr.mxu0 0.0
        %392 = vmatpush2.msra.mxu0 0.0
        %393 = vmatprep.subr.mxu0 0.0
        %394 = vmatpush2.msra.mxu0 0.0
        %395 = vmatprep.subr.mxu0 0.0
        %396 = vmatpush2.msra.mxu0 0.0
        %397 = vmatprep.subr.mxu0 0.0
        %398 = vmatpush2.msra.mxu0 0.0
        %399 = vmatprep.subr.mxu0 0.0
        %400 = vmatpush2.msra.mxu0 0.0
        %401 = vmatprep.subr.mxu0 0.0
        %402 = vmatpush2.msra.mxu0 0.0
        %403 = vmatprep.subr.mxu0 0.0
        %404 = vmatpush2.msra.mxu0 0.0
        %405 = vmatprep.subr.mxu0 0.0
        %406 = vmatpush2.msra.mxu0 0.0
        %407 = vmatprep.subr.mxu0 0.0
        %408 = vmatpush2.msra.mxu0 0.0
        %409 = vmatprep.subr.mxu0 0.0
        %410 = vmatpush2.msra.mxu0 0.0
        %411 = vmatprep.mubr.f32.mxu0 0.0
        %v412 = vand.u32 %v258, 4294901760
        %413 = vmatmul.mubr.f32.gmra.mxu0 %v412
        %v414 = vpop.f32.mrf.mxu0
        %v415 = vadd.f32 %v334, %v414
        %v416 = vpop.f32.mrf.mxu0
        %417 = vdwg.mxu0
        %418 = vmatprep.subr.mxu0 0.0
        %419 = vmatpush1.msra.mxu0 0.0
        %420 = vmatprep.subr.mxu0 0.0
        %421 = vmatpush1.msra.mxu0 0.0
        %422 = vmatprep.subr.mxu0 0.0
        %423 = vmatpush1.msra.mxu0 0.0
        %424 = vmatprep.subr.mxu0 0.0
        %425 = vmatpush1.msra.mxu0 0.0
        %426 = vmatprep.subr.mxu0 0.0
        %427 = vmatpush1.msra.mxu0 0.0
        %428 = vmatprep.subr.mxu0 0.0
        %429 = vmatpush1.msra.mxu0 0.0
        %430 = vmatprep.subr.mxu0 0.0
        %431 = vmatpush1.msra.mxu0 0.0
        %432 = vmatprep.subr.mxu0 0.0
        %433 = vmatpush1.msra.mxu0 0.0
        %434 = vmatprep.subr.mxu0 0.0
        %435 = vmatpush1.msra.mxu0 0.0
        %436 = vmatprep.subr.mxu0 0.0
        %437 = vmatpush1.msra.mxu0 0.0
        %438 = vmatprep.subr.mxu0 0.0
        %439 = vmatpush1.msra.mxu0 0.0
        %440 = vmatprep.subr.mxu0 0.0
        %441 = vmatpush1.msra.mxu0 0.0
        %442 = vmatprep.subr.mxu0 0.0
        %443 = vmatpush1.msra.mxu0 0.0
        %444 = vmatprep.subr.mxu0 0.0
        %445 = vmatpush1.msra.mxu0 0.0
        %446 = vmatprep.subr.mxu0 0.0
        %v447 = vand.u32 %v255, 4294901760
        %v448 = vsub.f32 %v255, %v447
        %449 = vmatpush1.msra.mxu0 %v448
        %450 = vmatprep.subr.mxu0 0.0
        %v451 = vand.u32 %v254, 4294901760
        %v452 = vsub.f32 %v254, %v451
        %453 = vmatpush1.msra.mxu0 %v452
        %454 = vmatprep.subr.mxu0 0.0
        %455 = vmatpush2.msra.mxu0 0.0
        %456 = vmatprep.subr.mxu0 0.0
        %457 = vmatpush2.msra.mxu0 0.0
        %458 = vmatprep.subr.mxu0 0.0
        %459 = vmatpush2.msra.mxu0 0.0
        %460 = vmatprep.subr.mxu0 0.0
        %461 = vmatpush2.msra.mxu0 0.0
        %462 = vmatprep.subr.mxu0 0.0
        %463 = vmatpush2.msra.mxu0 0.0
        %464 = vmatprep.subr.mxu0 0.0
        %465 = vmatpush2.msra.mxu0 0.0
        %466 = vmatprep.subr.mxu0 0.0
        %467 = vmatpush2.msra.mxu0 0.0
        %468 = vmatprep.subr.mxu0 0.0
        %469 = vmatpush2.msra.mxu0 0.0
        %470 = vmatprep.subr.mxu0 0.0
        %471 = vmatpush2.msra.mxu0 0.0
        %472 = vmatprep.subr.mxu0 0.0
        %473 = vmatpush2.msra.mxu0 0.0
        %474 = vmatprep.subr.mxu0 0.0
        %475 = vmatpush2.msra.mxu0 0.0
        %476 = vmatprep.subr.mxu0 0.0
        %477 = vmatpush2.msra.mxu0 0.0
        %478 = vmatprep.subr.mxu0 0.0
        %479 = vmatpush2.msra.mxu0 0.0
        %480 = vmatprep.subr.mxu0 0.0
        %481 = vmatpush2.msra.mxu0 0.0
        %482 = vmatprep.subr.mxu0 0.0
        %483 = vmatpush2.msra.mxu0 0.0
        %484 = vmatprep.subr.mxu0 0.0
        %485 = vmatpush2.msra.mxu0 0.0
        %486 = vmatprep.mubr.f32.mxu0 0.0
        %v487 = vand.u32 %v258, 4294901760
        %v488 = vsub.f32 %v258, %v487
        %489 = vmatmul.mubr.f32.gmra.mxu0 %v488
        %v490 = vpop.f32.mrf.mxu0
        %v491 = vadd.f32 %v415, %v490
        %v492 = vpop.f32.mrf.mxu0
        %493 = vdwg.mxu0
        %494 = vmatprep.subr.mxu0 0.0
        %495 = vmatpush1.msra.mxu0 0.0
        %496 = vmatprep.subr.mxu0 0.0
        %497 = vmatpush1.msra.mxu0 0.0
        %498 = vmatprep.subr.mxu0 0.0
        %499 = vmatpush1.msra.mxu0 0.0
        %500 = vmatprep.subr.mxu0 0.0
        %501 = vmatpush1.msra.mxu0 0.0
        %502 = vmatprep.subr.mxu0 0.0
        %503 = vmatpush1.msra.mxu0 0.0
        %504 = vmatprep.subr.mxu0 0.0
        %505 = vmatpush1.msra.mxu0 0.0
        %506 = vmatprep.subr.mxu0 0.0
        %507 = vmatpush1.msra.mxu0 0.0
        %508 = vmatprep.subr.mxu0 0.0
        %509 = vmatpush1.msra.mxu0 0.0
        %510 = vmatprep.subr.mxu0 0.0
        %511 = vmatpush1.msra.mxu0 0.0
        %512 = vmatprep.subr.mxu0 0.0
        %513 = vmatpush1.msra.mxu0 0.0
        %514 = vmatprep.subr.mxu0 0.0
        %515 = vmatpush1.msra.mxu0 0.0
        %516 = vmatprep.subr.mxu0 0.0
        %517 = vmatpush1.msra.mxu0 0.0
        %518 = vmatprep.subr.mxu0 0.0
        %519 = vmatpush1.msra.mxu0 0.0
        %520 = vmatprep.subr.mxu0 0.0
        %521 = vmatpush1.msra.mxu0 0.0
        %522 = vmatprep.subr.mxu0 0.0
        %v523 = vand.u32 %v255, 4294901760
        %524 = vmatpush1.msra.mxu0 %v523
        %525 = vmatprep.subr.mxu0 0.0
        %v526 = vand.u32 %v254, 4294901760
        %527 = vmatpush1.msra.mxu0 %v526
        %528 = vmatprep.subr.mxu0 0.0
        %529 = vmatpush2.msra.mxu0 0.0
        %530 = vmatprep.subr.mxu0 0.0
        %531 = vmatpush2.msra.mxu0 0.0
        %532 = vmatprep.subr.mxu0 0.0
        %533 = vmatpush2.msra.mxu0 0.0
        %534 = vmatprep.subr.mxu0 0.0
        %535 = vmatpush2.msra.mxu0 0.0
        %536 = vmatprep.subr.mxu0 0.0
        %537 = vmatpush2.msra.mxu0 0.0
        %538 = vmatprep.subr.mxu0 0.0
        %539 = vmatpush2.msra.mxu0 0.0
        %540 = vmatprep.subr.mxu0 0.0
        %541 = vmatpush2.msra.mxu0 0.0
        %542 = vmatprep.subr.mxu0 0.0
        %543 = vmatpush2.msra.mxu0 0.0
        %544 = vmatprep.subr.mxu0 0.0
        %545 = vmatpush2.msra.mxu0 0.0
        %546 = vmatprep.subr.mxu0 0.0
        %547 = vmatpush2.msra.mxu0 0.0
        %548 = vmatprep.subr.mxu0 0.0
        %549 = vmatpush2.msra.mxu0 0.0
        %550 = vmatprep.subr.mxu0 0.0
        %551 = vmatpush2.msra.mxu0 0.0
        %552 = vmatprep.subr.mxu0 0.0
        %553 = vmatpush2.msra.mxu0 0.0
        %554 = vmatprep.subr.mxu0 0.0
        %555 = vmatpush2.msra.mxu0 0.0
        %556 = vmatprep.subr.mxu0 0.0
        %557 = vmatpush2.msra.mxu0 0.0
        %558 = vmatprep.subr.mxu0 0.0
        %559 = vmatpush2.msra.mxu0 0.0
        %560 = vmatprep.mubr.f32.mxu0 0.0
        %v561 = vand.u32 %v258, 4294901760
        %v562 = vsub.f32 %v258, %v561
        %v563 = vand.u32 %v562, 4294901760
        %564 = vmatmul.mubr.f32.gmra.mxu0 %v563
        %v565 = vpop.f32.mrf.mxu0
        %v566 = vadd.f32 %v491, %v565
        %v567 = vpop.f32.mrf.mxu0
        %568 = vdwg.mxu0
        %569 = vmatprep.subr.mxu0 0.0
        %570 = vmatpush1.msra.mxu0 0.0
        %571 = vmatprep.subr.mxu0 0.0
        %572 = vmatpush1.msra.mxu0 0.0
        %573 = vmatprep.subr.mxu0 0.0
        %574 = vmatpush1.msra.mxu0 0.0
        %575 = vmatprep.subr.mxu0 0.0
        %576 = vmatpush1.msra.mxu0 0.0
        %577 = vmatprep.subr.mxu0 0.0
        %578 = vmatpush1.msra.mxu0 0.0
        %579 = vmatprep.subr.mxu0 0.0
        %580 = vmatpush1.msra.mxu0 0.0
        %581 = vmatprep.subr.mxu0 0.0
        %582 = vmatpush1.msra.mxu0 0.0
        %583 = vmatprep.subr.mxu0 0.0
        %584 = vmatpush1.msra.mxu0 0.0
        %585 = vmatprep.subr.mxu0 0.0
        %586 = vmatpush1.msra.mxu0 0.0
        %587 = vmatprep.subr.mxu0 0.0
        %588 = vmatpush1.msra.mxu0 0.0
        %589 = vmatprep.subr.mxu0 0.0
        %590 = vmatpush1.msra.mxu0 0.0
        %591 = vmatprep.subr.mxu0 0.0
        %592 = vmatpush1.msra.mxu0 0.0
        %593 = vmatprep.subr.mxu0 0.0
        %594 = vmatpush1.msra.mxu0 0.0
        %595 = vmatprep.subr.mxu0 0.0
        %596 = vmatpush1.msra.mxu0 0.0
        %597 = vmatprep.subr.mxu0 0.0
        %v598 = vand.u32 %v255, 4294901760
        %v599 = vsub.f32 %v255, %v598
        %v600 = vand.u32 %v599, 4294901760
        %601 = vmatpush1.msra.mxu0 %v600
        %602 = vmatprep.subr.mxu0 0.0
        %v603 = vand.u32 %v254, 4294901760
        %v604 = vsub.f32 %v254, %v603
        %v605 = vand.u32 %v604, 4294901760
        %606 = vmatpush1.msra.mxu0 %v605
        %607 = vmatprep.subr.mxu0 0.0
        %608 = vmatpush2.msra.mxu0 0.0
        %609 = vmatprep.subr.mxu0 0.0
        %610 = vmatpush2.msra.mxu0 0.0
        %611 = vmatprep.subr.mxu0 0.0
        %612 = vmatpush2.msra.mxu0 0.0
        %613 = vmatprep.subr.mxu0 0.0
        %614 = vmatpush2.msra.mxu0 0.0
        %615 = vmatprep.subr.mxu0 0.0
        %616 = vmatpush2.msra.mxu0 0.0
        %617 = vmatprep.subr.mxu0 0.0
        %618 = vmatpush2.msra.mxu0 0.0
        %619 = vmatprep.subr.mxu0 0.0
        %620 = vmatpush2.msra.mxu0 0.0
        %621 = vmatprep.subr.mxu0 0.0
        %622 = vmatpush2.msra.mxu0 0.0
        %623 = vmatprep.subr.mxu0 0.0
        %624 = vmatpush2.msra.mxu0 0.0
        %625 = vmatprep.subr.mxu0 0.0
        %626 = vmatpush2.msra.mxu0 0.0
        %627 = vmatprep.subr.mxu0 0.0
        %628 = vmatpush2.msra.mxu0 0.0
        %629 = vmatprep.subr.mxu0 0.0
        %630 = vmatpush2.msra.mxu0 0.0
        %631 = vmatprep.subr.mxu0 0.0
        %632 = vmatpush2.msra.mxu0 0.0
        %633 = vmatprep.subr.mxu0 0.0
        %634 = vmatpush2.msra.mxu0 0.0
        %635 = vmatprep.subr.mxu0 0.0
        %636 = vmatpush2.msra.mxu0 0.0
        %637 = vmatprep.subr.mxu0 0.0
        %638 = vmatpush2.msra.mxu0 0.0
        %639 = vmatprep.mubr.f32.mxu0 0.0
        %v640 = vand.u32 %v258, 4294901760
        %641 = vmatmul.mubr.f32.gmra.mxu0 %v640
        %v642 = vpop.f32.mrf.mxu0
        %v643 = vadd.f32 %v566, %v642
        %v644 = vpop.f32.mrf.mxu0
        %645 = vdwg.mxu0
        %646 = vmatprep.subr.mxu0 0.0
        %647 = vmatpush1.msra.mxu0 0.0
        %648 = vmatprep.subr.mxu0 0.0
        %649 = vmatpush1.msra.mxu0 0.0
        %650 = vmatprep.subr.mxu0 0.0
        %651 = vmatpush1.msra.mxu0 0.0
        %652 = vmatprep.subr.mxu0 0.0
        %653 = vmatpush1.msra.mxu0 0.0
        %654 = vmatprep.subr.mxu0 0.0
        %655 = vmatpush1.msra.mxu0 0.0
        %656 = vmatprep.subr.mxu0 0.0
        %657 = vmatpush1.msra.mxu0 0.0
        %658 = vmatprep.subr.mxu0 0.0
        %659 = vmatpush1.msra.mxu0 0.0
        %660 = vmatprep.subr.mxu0 0.0
        %661 = vmatpush1.msra.mxu0 0.0
        %662 = vmatprep.subr.mxu0 0.0
        %663 = vmatpush1.msra.mxu0 0.0
        %664 = vmatprep.subr.mxu0 0.0
        %665 = vmatpush1.msra.mxu0 0.0
        %666 = vmatprep.subr.mxu0 0.0
        %667 = vmatpush1.msra.mxu0 0.0
        %668 = vmatprep.subr.mxu0 0.0
        %669 = vmatpush1.msra.mxu0 0.0
        %670 = vmatprep.subr.mxu0 0.0
        %671 = vmatpush1.msra.mxu0 0.0
        %672 = vmatprep.subr.mxu0 0.0
        %673 = vmatpush1.msra.mxu0 0.0
        %674 = vmatprep.subr.mxu0 0.0
        %v675 = vand.u32 %v255, 4294901760
        %676 = vmatpush1.msra.mxu0 %v675
        %677 = vmatprep.subr.mxu0 0.0
        %v678 = vand.u32 %v254, 4294901760
        %679 = vmatpush1.msra.mxu0 %v678
        %680 = vmatprep.subr.mxu0 0.0
        %681 = vmatpush2.msra.mxu0 0.0
        %682 = vmatprep.subr.mxu0 0.0
        %683 = vmatpush2.msra.mxu0 0.0
        %684 = vmatprep.subr.mxu0 0.0
        %685 = vmatpush2.msra.mxu0 0.0
        %686 = vmatprep.subr.mxu0 0.0
        %687 = vmatpush2.msra.mxu0 0.0
        %688 = vmatprep.subr.mxu0 0.0
        %689 = vmatpush2.msra.mxu0 0.0
        %690 = vmatprep.subr.mxu0 0.0
        %691 = vmatpush2.msra.mxu0 0.0
        %692 = vmatprep.subr.mxu0 0.0
        %693 = vmatpush2.msra.mxu0 0.0
        %694 = vmatprep.subr.mxu0 0.0
        %695 = vmatpush2.msra.mxu0 0.0
        %696 = vmatprep.subr.mxu0 0.0
        %697 = vmatpush2.msra.mxu0 0.0
        %698 = vmatprep.subr.mxu0 0.0
        %699 = vmatpush2.msra.mxu0 0.0
        %700 = vmatprep.subr.mxu0 0.0
        %701 = vmatpush2.msra.mxu0 0.0
        %702 = vmatprep.subr.mxu0 0.0
        %703 = vmatpush2.msra.mxu0 0.0
        %704 = vmatprep.subr.mxu0 0.0
        %705 = vmatpush2.msra.mxu0 0.0
        %706 = vmatprep.subr.mxu0 0.0
        %707 = vmatpush2.msra.mxu0 0.0
        %708 = vmatprep.subr.mxu0 0.0
        %709 = vmatpush2.msra.mxu0 0.0
        %710 = vmatprep.subr.mxu0 0.0
        %711 = vmatpush2.msra.mxu0 0.0
        %712 = vmatprep.mubr.f32.mxu0 0.0
        %v713 = vand.u32 %v258, 4294901760
        %714 = vmatmul.mubr.f32.gmra.mxu0 %v713
        %v715 = vpop.f32.mrf.mxu0
        %v716 = vadd.f32 %v643, %v715
        %v717 = vpop.f32.mrf.mxu0
        %718 = vdwg.mxu0
        %v720 = vsel %vm256, %v250, 0
        %722 = vmatprep.subr.mxu0 0.0
        %723 = vmatpush1.msra.mxu0 0.0
        %724 = vmatprep.subr.mxu0 0.0
        %725 = vmatpush1.msra.mxu0 0.0
        %726 = vmatprep.subr.mxu0 0.0
        %727 = vmatpush1.msra.mxu0 0.0
        %728 = vmatprep.subr.mxu0 0.0
        %729 = vmatpush1.msra.mxu0 0.0
        %730 = vmatprep.subr.mxu0 0.0
        %731 = vmatpush1.msra.mxu0 0.0
        %732 = vmatprep.subr.mxu0 0.0
        %733 = vmatpush1.msra.mxu0 0.0
        %734 = vmatprep.subr.mxu0 0.0
        %735 = vmatpush1.msra.mxu0 0.0
        %736 = vmatprep.subr.mxu0 0.0
        %737 = vmatpush1.msra.mxu0 0.0
        %738 = vmatprep.subr.mxu0 0.0
        %739 = vmatpush1.msra.mxu0 0.0
        %740 = vmatprep.subr.mxu0 0.0
        %741 = vmatpush1.msra.mxu0 0.0
        %742 = vmatprep.subr.mxu0 0.0
        %743 = vmatpush1.msra.mxu0 0.0
        %744 = vmatprep.subr.mxu0 0.0
        %745 = vmatpush1.msra.mxu0 0.0
        %746 = vmatprep.subr.mxu0 0.0
        %747 = vmatpush1.msra.mxu0 0.0
        %748 = vmatprep.subr.mxu0 0.0
        %749 = vmatpush1.msra.mxu0 0.0
        %750 = vmatprep.subr.mxu0 0.0
        %v751 = vand.u32 %v253, 4294901760
        %752 = vmatpush1.msra.mxu0 %v751
        %753 = vmatprep.subr.mxu0 0.0
        %v754 = vand.u32 %v252, 4294901760
        %755 = vmatpush1.msra.mxu0 %v754
        %756 = vmatprep.subr.mxu0 0.0
        %757 = vmatpush2.msra.mxu0 0.0
        %758 = vmatprep.subr.mxu0 0.0
        %759 = vmatpush2.msra.mxu0 0.0
        %760 = vmatprep.subr.mxu0 0.0
        %761 = vmatpush2.msra.mxu0 0.0
        %762 = vmatprep.subr.mxu0 0.0
        %763 = vmatpush2.msra.mxu0 0.0
        %764 = vmatprep.subr.mxu0 0.0
        %765 = vmatpush2.msra.mxu0 0.0
        %766 = vmatprep.subr.mxu0 0.0
        %767 = vmatpush2.msra.mxu0 0.0
        %768 = vmatprep.subr.mxu0 0.0
        %769 = vmatpush2.msra.mxu0 0.0
        %770 = vmatprep.subr.mxu0 0.0
        %771 = vmatpush2.msra.mxu0 0.0
        %772 = vmatprep.subr.mxu0 0.0
        %773 = vmatpush2.msra.mxu0 0.0
        %774 = vmatprep.subr.mxu0 0.0
        %775 = vmatpush2.msra.mxu0 0.0
        %776 = vmatprep.subr.mxu0 0.0
        %777 = vmatpush2.msra.mxu0 0.0
        %778 = vmatprep.subr.mxu0 0.0
        %779 = vmatpush2.msra.mxu0 0.0
        %780 = vmatprep.subr.mxu0 0.0
        %781 = vmatpush2.msra.mxu0 0.0
        %782 = vmatprep.subr.mxu0 0.0
        %783 = vmatpush2.msra.mxu0 0.0
        %784 = vmatprep.subr.mxu0 0.0
        %785 = vmatpush2.msra.mxu0 0.0
        %786 = vmatprep.subr.mxu0 0.0
        %787 = vmatpush2.msra.mxu0 0.0
        %788 = vmatprep.mubr.f32.mxu0 0.0
        %v789 = vand.u32 %v720, 4294901760
        %v790 = vsub.f32 %v720, %v789
        %v791 = vand.u32 %v790, 4294901760
        %v792 = vsub.f32 %v790, %v791
        %v793 = vand.u32 %v792, 4294901760
        %794 = vmatmul.mubr.f32.gmra.mxu0 %v793
        %v795 = vpop.f32.mrf.mxu0
        %v796 = vadd.f32 %v716, %v795
        %v797 = vpop.f32.mrf.mxu0
        %798 = vdwg.mxu0
        %799 = vmatprep.subr.mxu0 0.0
        %800 = vmatpush1.msra.mxu0 0.0
        %801 = vmatprep.subr.mxu0 0.0
        %802 = vmatpush1.msra.mxu0 0.0
        %803 = vmatprep.subr.mxu0 0.0
        %804 = vmatpush1.msra.mxu0 0.0
        %805 = vmatprep.subr.mxu0 0.0
        %806 = vmatpush1.msra.mxu0 0.0
        %807 = vmatprep.subr.mxu0 0.0
        %808 = vmatpush1.msra.mxu0 0.0
        %809 = vmatprep.subr.mxu0 0.0
        %810 = vmatpush1.msra.mxu0 0.0
        %811 = vmatprep.subr.mxu0 0.0
        %812 = vmatpush1.msra.mxu0 0.0
        %813 = vmatprep.subr.mxu0 0.0
        %814 = vmatpush1.msra.mxu0 0.0
        %815 = vmatprep.subr.mxu0 0.0
        %816 = vmatpush1.msra.mxu0 0.0
        %817 = vmatprep.subr.mxu0 0.0
        %818 = vmatpush1.msra.mxu0 0.0
        %819 = vmatprep.subr.mxu0 0.0
        %820 = vmatpush1.msra.mxu0 0.0
        %821 = vmatprep.subr.mxu0 0.0
        %822 = vmatpush1.msra.mxu0 0.0
        %823 = vmatprep.subr.mxu0 0.0
        %824 = vmatpush1.msra.mxu0 0.0
        %825 = vmatprep.subr.mxu0 0.0
        %826 = vmatpush1.msra.mxu0 0.0
        %827 = vmatprep.subr.mxu0 0.0
        %v828 = vand.u32 %v253, 4294901760
        %v829 = vsub.f32 %v253, %v828
        %v830 = vand.u32 %v829, 4294901760
        %v831 = vsub.f32 %v829, %v830
        %v832 = vand.u32 %v831, 4294901760
        %833 = vmatpush1.msra.mxu0 %v832
        %834 = vmatprep.subr.mxu0 0.0
        %v835 = vand.u32 %v252, 4294901760
        %v836 = vsub.f32 %v252, %v835
        %v837 = vand.u32 %v836, 4294901760
        %v838 = vsub.f32 %v836, %v837
        %v839 = vand.u32 %v838, 4294901760
        %840 = vmatpush1.msra.mxu0 %v839
        %841 = vmatprep.subr.mxu0 0.0
        %842 = vmatpush2.msra.mxu0 0.0
        %843 = vmatprep.subr.mxu0 0.0
        %844 = vmatpush2.msra.mxu0 0.0
        %845 = vmatprep.subr.mxu0 0.0
        %846 = vmatpush2.msra.mxu0 0.0
        %847 = vmatprep.subr.mxu0 0.0
        %848 = vmatpush2.msra.mxu0 0.0
        %849 = vmatprep.subr.mxu0 0.0
        %850 = vmatpush2.msra.mxu0 0.0
        %851 = vmatprep.subr.mxu0 0.0
        %852 = vmatpush2.msra.mxu0 0.0
        %853 = vmatprep.subr.mxu0 0.0
        %854 = vmatpush2.msra.mxu0 0.0
        %855 = vmatprep.subr.mxu0 0.0
        %856 = vmatpush2.msra.mxu0 0.0
        %857 = vmatprep.subr.mxu0 0.0
        %858 = vmatpush2.msra.mxu0 0.0
        %859 = vmatprep.subr.mxu0 0.0
        %860 = vmatpush2.msra.mxu0 0.0
        %861 = vmatprep.subr.mxu0 0.0
        %862 = vmatpush2.msra.mxu0 0.0
        %863 = vmatprep.subr.mxu0 0.0
        %864 = vmatpush2.msra.mxu0 0.0
        %865 = vmatprep.subr.mxu0 0.0
        %866 = vmatpush2.msra.mxu0 0.0
        %867 = vmatprep.subr.mxu0 0.0
        %868 = vmatpush2.msra.mxu0 0.0
        %869 = vmatprep.subr.mxu0 0.0
        %870 = vmatpush2.msra.mxu0 0.0
        %871 = vmatprep.subr.mxu0 0.0
        %872 = vmatpush2.msra.mxu0 0.0
        %873 = vmatprep.mubr.f32.mxu0 0.0
        %v874 = vand.u32 %v720, 4294901760
        %875 = vmatmul.mubr.f32.gmra.mxu0 %v874
        %v876 = vpop.f32.mrf.mxu0
        %v877 = vadd.f32 %v796, %v876
        %v878 = vpop.f32.mrf.mxu0
        %879 = vdwg.mxu0
        %880 = vmatprep.subr.mxu0 0.0
        %881 = vmatpush1.msra.mxu0 0.0
        %882 = vmatprep.subr.mxu0 0.0
        %883 = vmatpush1.msra.mxu0 0.0
        %884 = vmatprep.subr.mxu0 0.0
        %885 = vmatpush1.msra.mxu0 0.0
        %886 = vmatprep.subr.mxu0 0.0
        %887 = vmatpush1.msra.mxu0 0.0
        %888 = vmatprep.subr.mxu0 0.0
        %889 = vmatpush1.msra.mxu0 0.0
        %890 = vmatprep.subr.mxu0 0.0
        %891 = vmatpush1.msra.mxu0 0.0
        %892 = vmatprep.subr.mxu0 0.0
        %893 = vmatpush1.msra.mxu0 0.0
        %894 = vmatprep.subr.mxu0 0.0
        %895 = vmatpush1.msra.mxu0 0.0
        %896 = vmatprep.subr.mxu0 0.0
        %897 = vmatpush1.msra.mxu0 0.0
        %898 = vmatprep.subr.mxu0 0.0
        %899 = vmatpush1.msra.mxu0 0.0
        %900 = vmatprep.subr.mxu0 0.0
        %901 = vmatpush1.msra.mxu0 0.0
        %902 = vmatprep.subr.mxu0 0.0
        %903 = vmatpush1.msra.mxu0 0.0
        %904 = vmatprep.subr.mxu0 0.0
        %905 = vmatpush1.msra.mxu0 0.0
        %906 = vmatprep.subr.mxu0 0.0
        %907 = vmatpush1.msra.mxu0 0.0
        %908 = vmatprep.subr.mxu0 0.0
        %v909 = vand.u32 %v253, 4294901760
        %v910 = vsub.f32 %v253, %v909
        %911 = vmatpush1.msra.mxu0 %v910
        %912 = vmatprep.subr.mxu0 0.0
        %v913 = vand.u32 %v252, 4294901760
        %v914 = vsub.f32 %v252, %v913
        %915 = vmatpush1.msra.mxu0 %v914
        %916 = vmatprep.subr.mxu0 0.0
        %917 = vmatpush2.msra.mxu0 0.0
        %918 = vmatprep.subr.mxu0 0.0
        %919 = vmatpush2.msra.mxu0 0.0
        %920 = vmatprep.subr.mxu0 0.0
        %921 = vmatpush2.msra.mxu0 0.0
        %922 = vmatprep.subr.mxu0 0.0
        %923 = vmatpush2.msra.mxu0 0.0
        %924 = vmatprep.subr.mxu0 0.0
        %925 = vmatpush2.msra.mxu0 0.0
        %926 = vmatprep.subr.mxu0 0.0
        %927 = vmatpush2.msra.mxu0 0.0
        %928 = vmatprep.subr.mxu0 0.0
        %929 = vmatpush2.msra.mxu0 0.0
        %930 = vmatprep.subr.mxu0 0.0
        %931 = vmatpush2.msra.mxu0 0.0
        %932 = vmatprep.subr.mxu0 0.0
        %933 = vmatpush2.msra.mxu0 0.0
        %934 = vmatprep.subr.mxu0 0.0
        %935 = vmatpush2.msra.mxu0 0.0
        %936 = vmatprep.subr.mxu0 0.0
        %937 = vmatpush2.msra.mxu0 0.0
        %938 = vmatprep.subr.mxu0 0.0
        %939 = vmatpush2.msra.mxu0 0.0
        %940 = vmatprep.subr.mxu0 0.0
        %941 = vmatpush2.msra.mxu0 0.0
        %942 = vmatprep.subr.mxu0 0.0
        %943 = vmatpush2.msra.mxu0 0.0
        %944 = vmatprep.subr.mxu0 0.0
        %945 = vmatpush2.msra.mxu0 0.0
        %946 = vmatprep.subr.mxu0 0.0
        %947 = vmatpush2.msra.mxu0 0.0
        %948 = vmatprep.mubr.f32.mxu0 0.0
        %v949 = vand.u32 %v720, 4294901760
        %v950 = vsub.f32 %v720, %v949
        %951 = vmatmul.mubr.f32.gmra.mxu0 %v950
        %v952 = vpop.f32.mrf.mxu0
        %v953 = vadd.f32 %v877, %v952
        %v954 = vpop.f32.mrf.mxu0
        %955 = vdwg.mxu0
        %956 = vmatprep.subr.mxu0 0.0
        %957 = vmatpush1.msra.mxu0 0.0
        %958 = vmatprep.subr.mxu0 0.0
        %959 = vmatpush1.msra.mxu0 0.0
        %960 = vmatprep.subr.mxu0 0.0
        %961 = vmatpush1.msra.mxu0 0.0
        %962 = vmatprep.subr.mxu0 0.0
        %963 = vmatpush1.msra.mxu0 0.0
        %964 = vmatprep.subr.mxu0 0.0
        %965 = vmatpush1.msra.mxu0 0.0
        %966 = vmatprep.subr.mxu0 0.0
        %967 = vmatpush1.msra.mxu0 0.0
        %968 = vmatprep.subr.mxu0 0.0
        %969 = vmatpush1.msra.mxu0 0.0
        %970 = vmatprep.subr.mxu0 0.0
        %971 = vmatpush1.msra.mxu0 0.0
        %972 = vmatprep.subr.mxu0 0.0
        %973 = vmatpush1.msra.mxu0 0.0
        %974 = vmatprep.subr.mxu0 0.0
        %975 = vmatpush1.msra.mxu0 0.0
        %976 = vmatprep.subr.mxu0 0.0
        %977 = vmatpush1.msra.mxu0 0.0
        %978 = vmatprep.subr.mxu0 0.0
        %979 = vmatpush1.msra.mxu0 0.0
        %980 = vmatprep.subr.mxu0 0.0
        %981 = vmatpush1.msra.mxu0 0.0
        %982 = vmatprep.subr.mxu0 0.0
        %983 = vmatpush1.msra.mxu0 0.0
        %984 = vmatprep.subr.mxu0 0.0
        %v985 = vand.u32 %v253, 4294901760
        %986 = vmatpush1.msra.mxu0 %v985
        %987 = vmatprep.subr.mxu0 0.0
        %v988 = vand.u32 %v252, 4294901760
        %989 = vmatpush1.msra.mxu0 %v988
        %990 = vmatprep.subr.mxu0 0.0
        %991 = vmatpush2.msra.mxu0 0.0
        %992 = vmatprep.subr.mxu0 0.0
        %993 = vmatpush2.msra.mxu0 0.0
        %994 = vmatprep.subr.mxu0 0.0
        %995 = vmatpush2.msra.mxu0 0.0
        %996 = vmatprep.subr.mxu0 0.0
        %997 = vmatpush2.msra.mxu0 0.0
        %998 = vmatprep.subr.mxu0 0.0
        %999 = vmatpush2.msra.mxu0 0.0
        %1000 = vmatprep.subr.mxu0 0.0
        %1001 = vmatpush2.msra.mxu0 0.0
        %1002 = vmatprep.subr.mxu0 0.0
        %1003 = vmatpush2.msra.mxu0 0.0
        %1004 = vmatprep.subr.mxu0 0.0
        %1005 = vmatpush2.msra.mxu0 0.0
        %1006 = vmatprep.subr.mxu0 0.0
        %1007 = vmatpush2.msra.mxu0 0.0
        %1008 = vmatprep.subr.mxu0 0.0
        %1009 = vmatpush2.msra.mxu0 0.0
        %1010 = vmatprep.subr.mxu0 0.0
        %1011 = vmatpush2.msra.mxu0 0.0
        %1012 = vmatprep.subr.mxu0 0.0
        %1013 = vmatpush2.msra.mxu0 0.0
        %1014 = vmatprep.subr.mxu0 0.0
        %1015 = vmatpush2.msra.mxu0 0.0
        %1016 = vmatprep.subr.mxu0 0.0
        %1017 = vmatpush2.msra.mxu0 0.0
        %1018 = vmatprep.subr.mxu0 0.0
        %1019 = vmatpush2.msra.mxu0 0.0
        %1020 = vmatprep.subr.mxu0 0.0
        %1021 = vmatpush2.msra.mxu0 0.0
        %1022 = vmatprep.mubr.f32.mxu0 0.0
        %v1023 = vand.u32 %v720, 4294901760
        %v1024 = vsub.f32 %v720, %v1023
        %v1025 = vand.u32 %v1024, 4294901760
        %1026 = vmatmul.mubr.f32.gmra.mxu0 %v1025
        %v1027 = vpop.f32.mrf.mxu0
        %v1028 = vadd.f32 %v953, %v1027
        %v1029 = vpop.f32.mrf.mxu0
        %1030 = vdwg.mxu0
        %1031 = vmatprep.subr.mxu0 0.0
        %1032 = vmatpush1.msra.mxu0 0.0
        %1033 = vmatprep.subr.mxu0 0.0
        %1034 = vmatpush1.msra.mxu0 0.0
        %1035 = vmatprep.subr.mxu0 0.0
        %1036 = vmatpush1.msra.mxu0 0.0
        %1037 = vmatprep.subr.mxu0 0.0
        %1038 = vmatpush1.msra.mxu0 0.0
        %1039 = vmatprep.subr.mxu0 0.0
        %1040 = vmatpush1.msra.mxu0 0.0
        %1041 = vmatprep.subr.mxu0 0.0
        %1042 = vmatpush1.msra.mxu0 0.0
        %1043 = vmatprep.subr.mxu0 0.0
        %1044 = vmatpush1.msra.mxu0 0.0
        %1045 = vmatprep.subr.mxu0 0.0
        %1046 = vmatpush1.msra.mxu0 0.0
        %1047 = vmatprep.subr.mxu0 0.0
        %1048 = vmatpush1.msra.mxu0 0.0
        %1049 = vmatprep.subr.mxu0 0.0
        %1050 = vmatpush1.msra.mxu0 0.0
        %1051 = vmatprep.subr.mxu0 0.0
        %1052 = vmatpush1.msra.mxu0 0.0
        %1053 = vmatprep.subr.mxu0 0.0
        %1054 = vmatpush1.msra.mxu0 0.0
        %1055 = vmatprep.subr.mxu0 0.0
        %1056 = vmatpush1.msra.mxu0 0.0
        %1057 = vmatprep.subr.mxu0 0.0
        %1058 = vmatpush1.msra.mxu0 0.0
        %1059 = vmatprep.subr.mxu0 0.0
        %v1060 = vand.u32 %v253, 4294901760
        %v1061 = vsub.f32 %v253, %v1060
        %v1062 = vand.u32 %v1061, 4294901760
        %1063 = vmatpush1.msra.mxu0 %v1062
        %1064 = vmatprep.subr.mxu0 0.0
        %v1065 = vand.u32 %v252, 4294901760
        %v1066 = vsub.f32 %v252, %v1065
        %v1067 = vand.u32 %v1066, 4294901760
        %1068 = vmatpush1.msra.mxu0 %v1067
        %1069 = vmatprep.subr.mxu0 0.0
        %1070 = vmatpush2.msra.mxu0 0.0
        %1071 = vmatprep.subr.mxu0 0.0
        %1072 = vmatpush2.msra.mxu0 0.0
        %1073 = vmatprep.subr.mxu0 0.0
        %1074 = vmatpush2.msra.mxu0 0.0
        %1075 = vmatprep.subr.mxu0 0.0
        %1076 = vmatpush2.msra.mxu0 0.0
        %1077 = vmatprep.subr.mxu0 0.0
        %1078 = vmatpush2.msra.mxu0 0.0
        %1079 = vmatprep.subr.mxu0 0.0
        %1080 = vmatpush2.msra.mxu0 0.0
        %1081 = vmatprep.subr.mxu0 0.0
        %1082 = vmatpush2.msra.mxu0 0.0
        %1083 = vmatprep.subr.mxu0 0.0
        %1084 = vmatpush2.msra.mxu0 0.0
        %1085 = vmatprep.subr.mxu0 0.0
        %1086 = vmatpush2.msra.mxu0 0.0
        %1087 = vmatprep.subr.mxu0 0.0
        %1088 = vmatpush2.msra.mxu0 0.0
        %1089 = vmatprep.subr.mxu0 0.0
        %1090 = vmatpush2.msra.mxu0 0.0
        %1091 = vmatprep.subr.mxu0 0.0
        %1092 = vmatpush2.msra.mxu0 0.0
        %1093 = vmatprep.subr.mxu0 0.0
        %1094 = vmatpush2.msra.mxu0 0.0
        %1095 = vmatprep.subr.mxu0 0.0
        %1096 = vmatpush2.msra.mxu0 0.0
        %1097 = vmatprep.subr.mxu0 0.0
        %1098 = vmatpush2.msra.mxu0 0.0
        %1099 = vmatprep.subr.mxu0 0.0
        %1100 = vmatpush2.msra.mxu0 0.0
        %1101 = vmatprep.mubr.f32.mxu0 0.0
        %v1102 = vand.u32 %v720, 4294901760
        %1103 = vmatmul.mubr.f32.gmra.mxu0 %v1102
        %v1104 = vpop.f32.mrf.mxu0
        %v1105 = vadd.f32 %v1028, %v1104
        %v1106 = vpop.f32.mrf.mxu0
        %1107 = vdwg.mxu0
        %1108 = vmatprep.subr.mxu0 0.0
        %1109 = vmatpush1.msra.mxu0 0.0
        %1110 = vmatprep.subr.mxu0 0.0
        %1111 = vmatpush1.msra.mxu0 0.0
        %1112 = vmatprep.subr.mxu0 0.0
        %1113 = vmatpush1.msra.mxu0 0.0
        %1114 = vmatprep.subr.mxu0 0.0
        %1115 = vmatpush1.msra.mxu0 0.0
        %1116 = vmatprep.subr.mxu0 0.0
        %1117 = vmatpush1.msra.mxu0 0.0
        %1118 = vmatprep.subr.mxu0 0.0
        %1119 = vmatpush1.msra.mxu0 0.0
        %1120 = vmatprep.subr.mxu0 0.0
        %1121 = vmatpush1.msra.mxu0 0.0
        %1122 = vmatprep.subr.mxu0 0.0
        %1123 = vmatpush1.msra.mxu0 0.0
        %1124 = vmatprep.subr.mxu0 0.0
        %1125 = vmatpush1.msra.mxu0 0.0
        %1126 = vmatprep.subr.mxu0 0.0
        %1127 = vmatpush1.msra.mxu0 0.0
        %1128 = vmatprep.subr.mxu0 0.0
        %1129 = vmatpush1.msra.mxu0 0.0
        %1130 = vmatprep.subr.mxu0 0.0
        %1131 = vmatpush1.msra.mxu0 0.0
        %1132 = vmatprep.subr.mxu0 0.0
        %1133 = vmatpush1.msra.mxu0 0.0
        %1134 = vmatprep.subr.mxu0 0.0
        %1135 = vmatpush1.msra.mxu0 0.0
        %1136 = vmatprep.subr.mxu0 0.0
        %v1137 = vand.u32 %v253, 4294901760
        %1138 = vmatpush1.msra.mxu0 %v1137
        %1139 = vmatprep.subr.mxu0 0.0
        %v1140 = vand.u32 %v252, 4294901760
        %1141 = vmatpush1.msra.mxu0 %v1140
        %1142 = vmatprep.subr.mxu0 0.0
        %1143 = vmatpush2.msra.mxu0 0.0
        %1144 = vmatprep.subr.mxu0 0.0
        %1145 = vmatpush2.msra.mxu0 0.0
        %1146 = vmatprep.subr.mxu0 0.0
        %1147 = vmatpush2.msra.mxu0 0.0
        %1148 = vmatprep.subr.mxu0 0.0
        %1149 = vmatpush2.msra.mxu0 0.0
        %1150 = vmatprep.subr.mxu0 0.0
        %1151 = vmatpush2.msra.mxu0 0.0
        %1152 = vmatprep.subr.mxu0 0.0
        %1153 = vmatpush2.msra.mxu0 0.0
        %1154 = vmatprep.subr.mxu0 0.0
        %1155 = vmatpush2.msra.mxu0 0.0
        %1156 = vmatprep.subr.mxu0 0.0
        %1157 = vmatpush2.msra.mxu0 0.0
        %1158 = vmatprep.subr.mxu0 0.0
        %1159 = vmatpush2.msra.mxu0 0.0
        %1160 = vmatprep.subr.mxu0 0.0
        %1161 = vmatpush2.msra.mxu0 0.0
        %1162 = vmatprep.subr.mxu0 0.0
        %1163 = vmatpush2.msra.mxu0 0.0
        %1164 = vmatprep.subr.mxu0 0.0
        %1165 = vmatpush2.msra.mxu0 0.0
        %1166 = vmatprep.subr.mxu0 0.0
        %1167 = vmatpush2.msra.mxu0 0.0
        %1168 = vmatprep.subr.mxu0 0.0
        %1169 = vmatpush2.msra.mxu0 0.0
        %1170 = vmatprep.subr.mxu0 0.0
        %1171 = vmatpush2.msra.mxu0 0.0
        %1172 = vmatprep.subr.mxu0 0.0
        %1173 = vmatpush2.msra.mxu0 0.0
        %1174 = vmatprep.mubr.f32.mxu0 0.0
        %v1175 = vand.u32 %v720, 4294901760
        %1176 = vmatmul.mubr.f32.gmra.mxu0 %v1175
        %v1177 = vpop.f32.mrf.mxu0
        %v1178 = vadd.f32 %v1105, %v1177
        %v1179 = vpop.f32.mrf.mxu0
        %1180 = vdwg.mxu0
        %vm1181 = vcmp.eq.s32.totalorder %v176, 31
        %v1182 = vsel %vm1181, 1, 0
        %vm1183 = vcmp.eq.s32.totalorder %v1182, 1
        %v1184 = vsel %vm1183, 1.0, %v1178
        %vm1185 = vcmask 261120
        %1186 = vst.msk [vmem:[%s151] sm:$0xff] %vm1185, %v1184
        %s1187 = sand.u32 %s68, 1
        %s1188 = scalar_lea.sflag [#allocation4], %s1187
        %s1189 = sand.u32 %s68, 1
        %s1190 = smul.addr %s1189, 8
        %s1191 = scalar_lea.vmem [#allocation7], %s1190
        // Predicated region
        $region37: #{tpu_custom_call.1} parent=27 // pred_check
          %p1192 = pneg %p78
        $region38: #{tpu_custom_call.1} parent=27 // pred_check_branch
          %1194 = sbr.rel (%p1192) target = $region40
        $region39: #{tpu_custom_call.1} parent=27 // pred_region
          %s1196 = ssub.s32 128, 128
          %1197 = vsyncadd %s1188, %s1196
          %s1198 = smul.addr %s18, 128
          %s1199 = scalar_lea.hbm %s2, %s1198
          %s1201 = sshll.u32 %s1191, 4
          %s1202 = int_to_ptr.vmem [resolvable:$true] %s1201
          %1204 = dma.vmem_to_hbm [thread:$0]  %s1202, 128, %s1199, %s1188
        $region40: #{tpu_custom_call.1} parent=27 // pred_fallthru
          _
      $region28: #{tpu_custom_call.1} parent=5 // pred_fallthru
        _
      %p1205 = scmp.le.s32.totalorder 2, %s13
      // Predicated region
      $region41: #{tpu_custom_call.1} parent=5 // pred_check
        %p1206 = pneg %p1205
      $region42: #{tpu_custom_call.1} parent=5 // pred_check_branch
        %1208 = sbr.rel (%p1206) target = $region44
      $region43: #{tpu_custom_call.1} parent=5 // pred_region
        %s1209 = ssub.s32 %s13, 2
        // Predicated region
        $region45: #{tpu_custom_call.1} parent=43 // pred_check
          %p1210 = pneg %p84
        $region46: #{tpu_custom_call.1} parent=43 // pred_check_branch
          %1212 = sbr.rel (%p1210) target = $region48
        $region47: #{tpu_custom_call.1} parent=43 // pred_region
          %s1213 = sand.u32 %s69, 1
          %s1214 = scalar_lea.sflag [#allocation4], %s1213
          %s1215 = sand.u32 %s69, 1
          %s1216 = smul.addr %s1215, 8
          %s1217 = scalar_lea.vmem [#allocation7], %s1216
          %1218 = dma.done %s1214, 128
        $region48: #{tpu_custom_call.1} parent=43 // pred_fallthru
          _
      $region44: #{tpu_custom_call.1} parent=5 // pred_fallthru
        _
    $region6: #{tpu_custom_call.1} parent=1 // loop_footer
      %s17 = sadd.s32 1, %s13
    $region7: #{tpu_custom_call.1} parent=1 // loop_footer_branch
      %12 = sbr.rel target = $region3
    $region8: #{tpu_custom_call.1} parent=1 // loop_exit
      _
    %1219 = vsyncpa [#allocation3], 1
    %s1220 = scalar_lea.sflag [#allocation3], 1
    %1221 = vsyncpa %s1220, 1
    %1222 = vsyncpa [#allocation6], 1
    %1223 = vsyncpa [#allocation4], 1
    %s1224 = scalar_lea.sflag [#allocation4], 1
    %1225 = vsyncpa %s1224, 1

</llo_original>
